<compile_context>
chip_gen: v6e
topology: v6e:2x2x1
jax: 0.10.0
libtpu: 0.0.40
codegen_flags: <defaults>
</compile_context>

<pallas_src>
import functools
import math

import jax
import jax.numpy as jnp
from jax.experimental import pallas as pl
from jax.experimental.pallas import tpu as pltpu

PAD = 128  # lane width: hidden / state / action dims are zero-padded to this.


# ----------------------------------------------------------------------------
# Helpers
# ----------------------------------------------------------------------------
def _round_up(x, m):
    return (x + m - 1) // m * m


def _cdiv(a, b):
    return -(-a // b)


def _default_act_dtype():
    """bf16 activations/tanh on v6e/v7x (bf16 VPU/EUP); f32 on v5e and older."""
    try:
        kind = jax.devices()[0].device_kind.lower()
    except Exception:
        return jnp.float32
    for old in ("v2", "v3", "v4", "v5"):
        if old in kind:
            return jnp.float32
    return jnp.bfloat16


# ----------------------------------------------------------------------------
# Kernel
# ----------------------------------------------------------------------------
def _policy_mlp_kernel(x_ref, w_ref, b_ref, out_ref, xpad_ref, *,
                       discrete: bool, action_dim: int, state_dim: int,
                       mxu_dtype, act_dtype):
    # Lane-pad the (TB, state_dim) input tile to (TB, 128) inside the kernel.
    # Zeroed every step (scratch is per-core; a program_id==0 gate would be
    # wrong when the grid is split across the two v7x TensorCores).
    xpad_ref[...] = jnp.zeros_like(xpad_ref)
    xpad_ref[:, :state_dim] = x_ref[...]

    h = xpad_ref[...]                    # (TB, 128) f32, padded lanes == 0
    b = b_ref[...]                       # (8, 128)  f32 biases (rows 4..7 = 0)

    # Three hidden layers: Linear -> Tanh.  Matmuls on the MXU with f32
    # accumulation; tanh in act_dtype (bf16 EUP on v6e/v7x, f32 on v5e).
    # Padded hidden lanes stay exactly 0 (zero weights + zero bias -> tanh(0)).
    for layer in range(3):
        z = jnp.dot(h.astype(mxu_dtype), w_ref[layer],
                    preferred_element_type=jnp.float32) + b[layer:layer + 1, :]
        h = jnp.tanh(z.astype(act_dtype))

    # Output layer (no activation), f32 logits.
    logits = (jnp.dot(h.astype(mxu_dtype), w_ref[3],
                      preferred_element_type=jnp.float32) + b[3:4, :])

    if discrete:
        # Masked softmax over the valid action lanes only.  exp(-1e30 - m)
        # underflows to exactly 0, so no second select is needed.
        col = jax.lax.broadcasted_iota(jnp.int32, logits.shape, 1)
        masked = jnp.where(col < action_dim, logits, jnp.float32(-1e30))
        m = jnp.max(masked, axis=-1, keepdims=True)
        e = jnp.exp(masked - m)
        s = jnp.sum(e, axis=-1, keepdims=True)
        r = pl.reciprocal(s, approx=True)   # EUP slot
        r = r * (2.0 - s * r)               # one Newton step -> ~f32 exact
        out_ref[...] = (e * r).astype(out_ref.dtype)
    else:
        out_ref[...] = logits.astype(out_ref.dtype)


# ----------------------------------------------------------------------------
# Wrapper
# ----------------------------------------------------------------------------
def policy_mlp(states, w_slab, b_slab, *, discrete: bool, action_dim: int,
               act_dtype=None, out_dtype=jnp.float32, max_batch_tile: int = 2048):
    """Runs the padded 4-layer MLP (+ masked softmax head) in one Pallas call."""
    B, state_dim = states.shape
    if act_dtype is None:
        act_dtype = _default_act_dtype()
    if w_slab.dtype == jnp.float32:
        act_dtype = jnp.float32  # never hold activations below weight precision

    # ---- batch tiling -------------------------------------------------------
    # Enough steps to cap the tile at max_batch_tile rows, and >= 2 (even)
    # steps for non-trivial batches so the "parallel" grid axis shards across
    # both v7x TensorCores.  TB is derived from ceil(B / n_steps) (not B from
    # TB), avoiding up-to-2x padding waste on awkward batch sizes.
    n_steps = max(1, _cdiv(B, max_batch_tile))
    if B > 256 and n_steps < 2:
        n_steps = 2
    if n_steps > 1 and n_steps % 2:
        n_steps += 1
    TB = max(16, _round_up(_cdiv(B, n_steps), 16))  # 16: bf16 sublane packing
    Bp = TB * n_steps

    # Batch-only padding (tiny: state_dim lanes, not 128).
    x = states.astype(jnp.float32)
    if Bp != B:
        x = jnp.zeros((Bp, state_dim), jnp.float32).at[:B].set(x)

    kernel = functools.partial(
        _policy_mlp_kernel, discrete=discrete, action_dim=action_dim,
        state_dim=state_dim, mxu_dtype=w_slab.dtype, act_dtype=act_dtype)

    flops = int(2 * Bp * 4 * PAD * PAD)
    transcendentals = int(Bp * PAD * (3 + (1 if discrete else 0)))
    bytes_accessed = int(x.size * 4
                         + w_slab.size * w_slab.dtype.itemsize
                         + b_slab.size * 4
                         + Bp * PAD * jnp.dtype(out_dtype).itemsize)

    out = pl.pallas_call(
        kernel,
        out_shape=jax.ShapeDtypeStruct((Bp, PAD), out_dtype),
        grid=(n_steps,),
        in_specs=[
            pl.BlockSpec((TB, state_dim), lambda i: (i, 0)),   # states (narrow)
            pl.BlockSpec((4, PAD, PAD), lambda i: (0, 0, 0)),  # weight slab
            pl.BlockSpec((8, PAD), lambda i: (0, 0)),          # bias slab
        ],
        out_specs=pl.BlockSpec((TB, PAD), lambda i: (i, 0)),   # lane-dense out
        scratch_shapes=[pltpu.VMEM((TB, PAD), jnp.float32)],   # in-kernel lane pad
        compiler_params=pltpu.CompilerParams(
            dimension_semantics=("parallel",),
            vmem_limit_bytes=32 * 1024 * 1024),
        cost_estimate=pl.CostEstimate(flops=flops,
                                      transcendentals=transcendentals,
                                      bytes_accessed=bytes_accessed),
    )(x, w_slab, b_slab)

    # TODO(synk): the final slice is a separate XLA op; large-batch callers can
    # keep the padded (Bp, 128) block (or a bf16 out_dtype) and slice lazily.
    return out[:B, :action_dim]


# ----------------------------------------------------------------------------
# Parameter construction (PyTorch-Linear-style uniform init, pre-padded once)
# ----------------------------------------------------------------------------
def init_policy_params(key, state_dim, action_dim, hidden=50,
                       mxu_dtype=jnp.bfloat16):
    """Returns (w_slab (4,128,128) mxu_dtype, b_slab (8,128) f32), zero-padded."""
    assert state_dim <= PAD and action_dim <= PAD and hidden <= PAD
    dims = [(state_dim, hidden), (hidden, hidden), (hidden, hidden),
            (hidden, action_dim)]
    w_slab = jnp.zeros((4, PAD, PAD), jnp.float32)
    b_slab = jnp.zeros((8, PAD), jnp.float32)
    for layer, (fan_in, fan_out) in enumerate(dims):
        key, kw, kb = jax.random.split(key, 3)
        bound = 1.0 / math.sqrt(fan_in)
        w = jax.random.uniform(kw, (fan_in, fan_out), jnp.float32, -bound, bound)
        b = jax.random.uniform(kb, (fan_out,), jnp.float32, -bound, bound)
        w_slab = w_slab.at[layer, :fan_in, :fan_out].set(w)
        b_slab = b_slab.at[layer, :fan_out].set(b)
    return w_slab.astype(mxu_dtype), b_slab


class PolicyNetworkPallas:
    """JAX/Pallas port of PolicyNetwork.forward.

    Returns distribution parameters instead of torch distribution objects:
      - discrete:   probs of shape (B, action_dim)          (Categorical probs)
      - continuous: (mean (B, action_dim), cov (A, A))      (MultivariateNormal)
    """

    def __init__(self, state_dim, action_dim, discrete, key, hidden=50,
                 mxu_dtype=jnp.bfloat16, act_dtype=None):
        self.state_dim = state_dim
        self.action_dim = action_dim
        self.discrete = discrete
        self.w_slab, self.b_slab = init_policy_params(
            key, state_dim, action_dim, hidden=hidden, mxu_dtype=mxu_dtype)
        self.act_dtype = (jnp.float32 if self.w_slab.dtype == jnp.float32
                          else (act_dtype or _default_act_dtype()))
        if not discrete:
            self.log_std = jnp.zeros((action_dim,), jnp.float32)

    def __call__(self, states):
        out = policy_mlp(states, self.w_slab, self.b_slab,
                         discrete=self.discrete, action_dim=self.action_dim,
                         act_dtype=self.act_dtype)
        if self.discrete:
            return out  # Categorical probs
        # TODO(synk): torch.distributions.MultivariateNormal object itself has
        # no Pallas equivalent; we return (mean, covariance matrix).
        std = jnp.exp(self.log_std)
        cov_mtx = jnp.eye(self.action_dim, dtype=jnp.float32) * std ** 2
        return out, cov_mtx


# ----------------------------------------------------------------------------
# Pure-JAX reference (mirrors the kernel's padded slabs + cast chain)
# ----------------------------------------------------------------------------
def _reference_forward(states, w_slab, b_slab, discrete, action_dim, act_dtype):
    B, sd = states.shape
    mxu = w_slab.dtype
    h = jnp.zeros((B, PAD), jnp.float32).at[:, :sd].set(
        states.astype(jnp.float32))
    for i in range(3):
        z = (jnp.dot(h.astype(mxu), w_slab[i],
                     preferred_element_type=jnp.float32) + b_slab[i:i + 1, :])
        h = jnp.tanh(z.astype(act_dtype))
    logits = (jnp.dot(h.astype(mxu), w_slab[3],
                      preferred_element_type=jnp.float32)
              + b_slab[3:4, :])[:, :action_dim]
    if discrete:
        return jax.nn.softmax(logits.astype(jnp.float32), axis=-1)
    return logits.astype(jnp.float32)


# ----------------------------------------------------------------------------
# Demo
# ----------------------------------------------------------------------------
if __name__ == "__main__":
    key = jax.random.PRNGKey(0)
    k_states, k_params_d, k_params_c, k_big = jax.random.split(key, 4)

    B, state_dim, action_dim = 8, 4, 3
    states = jax.random.normal(k_states, (B, state_dim), jnp.float32)

    # Discrete head: Categorical probs.
    net_d = PolicyNetworkPallas(state_dim, action_dim, discrete=True,
                                key=k_params_d)
    probs = net_d(states)
    jax.block_until_ready(probs)
    assert probs.shape == (B, action_dim)
    assert jnp.allclose(jnp.sum(probs, axis=-1), 1.0, atol=1e-4)
    ref_probs = _reference_forward(states, net_d.w_slab, net_d.b_slab,
                                   True, action_dim, net_d.act_dtype)
    assert jnp.allclose(probs, ref_probs, atol=1e-2), "discrete head mismatch"

    # Continuous head: MultivariateNormal mean + covariance.
    net_c = PolicyNetworkPallas(state_dim, action_dim, discrete=False,
                                key=k_params_c)
    mean, cov = net_c(states)
    jax.block_until_ready((mean, cov))
    assert mean.shape == (B, action_dim)
    assert cov.shape == (action_dim, action_dim)
    ref_mean = _reference_forward(states, net_c.w_slab, net_c.b_slab,
                                  False, action_dim, net_c.act_dtype)
    assert jnp.allclose(mean, ref_mean, atol=1e-2), "continuous head mismatch"

    # Larger batch: exercises the >=2-step "parallel" grid and batch padding.
    B2 = 300
    states2 = jax.random.normal(k_big, (B2, state_dim), jnp.float32)
    probs2 = net_d(states2)
    jax.block_until_ready(probs2)
    assert probs2.shape == (B2, action_dim)
    ref2 = _reference_forward(states2, net_d.w_slab, net_d.b_slab,
                              True, action_dim, net_d.act_dtype)
    assert jnp.allclose(probs2, ref2, atol=1e-2), "large-batch mismatch"

    print("KERNEL_OK")
</pallas_src>

<mosaic_0001>
module attributes {stable_mosaic.version = 11 : i64} {
  func.func @_policy_mlp_kernel(%arg0: i32, %arg1: memref<16x4xf32, #tpu.memory_space<vmem>>, %arg2: memref<4x128x128xbf16, #tpu.memory_space<vmem>>, %arg3: memref<8x128xf32, #tpu.memory_space<vmem>>, %arg4: memref<16x128xf32, #tpu.memory_space<vmem>>, %arg5: memref<16x128xf32, #tpu.memory_space<vmem>>) attributes {dimension_semantics = [#tpu.dimension_semantics<parallel>], iteration_bounds = array<i64: 1>, scalar_prefetch = 0 : i64, scratch_operands = 1 : i64, tpu.core_type = #tpu.core_type<tc>, window_params = [{transform_indices = @transform_0, window_bounds = array<i64: 16, 4>}, {pipeline_mode = #tpu.pipeline_mode<synchronous>, transform_indices = @transform_1, window_bounds = array<i64: 4, 128, 128>}, {pipeline_mode = #tpu.pipeline_mode<synchronous>, transform_indices = @transform_2, window_bounds = array<i64: 8, 128>}, {transform_indices = @transform_3, window_bounds = array<i64: 16, 128>}]} {
    %cst = arith.constant 0.000000e+00 : f32
    %0 = vector.broadcast %cst : f32 to vector<16x128xf32>
    %c0 = arith.constant 0 : index
    %c0_0 = arith.constant 0 : index
    %1 = vector.load %arg5[%c0, %c0_0] : memref<16x128xf32, #tpu.memory_space<vmem>>, vector<16x128xf32>
    tpu.vector_store %arg5[%c0, %c0_0], %0 {strides = array<i32>} : memref<16x128xf32, #tpu.memory_space<vmem>>, vector<16x128xf32>,
    %c0_1 = arith.constant 0 : index
    %c0_2 = arith.constant 0 : index
    %2 = vector.load %arg1[%c0_1, %c0_2] : memref<16x4xf32, #tpu.memory_space<vmem>>, vector<16x4xf32>
    %c0_3 = arith.constant 0 : index
    %c0_4 = arith.constant 0 : index
    %3 = vector.load %arg5[%c0_3, %c0_4] : memref<16x128xf32, #tpu.memory_space<vmem>>, vector<16x4xf32>
    tpu.vector_store %arg5[%c0_3, %c0_4], %2 {strides = array<i32>} : memref<16x128xf32, #tpu.memory_space<vmem>>, vector<16x4xf32>,
    %c0_5 = arith.constant 0 : index
    %c0_6 = arith.constant 0 : index
    %4 = vector.load %arg5[%c0_5, %c0_6] : memref<16x128xf32, #tpu.memory_space<vmem>>, vector<16x128xf32>
    %c0_7 = arith.constant 0 : index
    %c0_8 = arith.constant 0 : index
    %5 = vector.load %arg3[%c0_7, %c0_8] : memref<8x128xf32, #tpu.memory_space<vmem>>, vector<8x128xf32>
    %6 = arith.truncf %4 : vector<16x128xf32> to vector<16x128xbf16>
    %c0_9 = arith.constant 0 : index
    %c0_10 = arith.constant 0 : index
    %c0_11 = arith.constant 0 : index
    %7 = vector.load %arg2[%c0_9, %c0_10, %c0_11] : memref<4x128x128xbf16, #tpu.memory_space<vmem>>, vector<1x128x128xbf16>
    %8 = vector.shape_cast %7 : vector<1x128x128xbf16> to vector<128x128xbf16>
    %cst_12 = arith.constant dense<0.000000e+00> : vector<16x128xf32>
    %9 = tpu.matmul %6, %8, %cst_12 {dimension_numbers = #tpu.dot_dimension_numbers<[1], [0], [0], [1], [0, 0, 1, 1], [], []>} : vector<16x128xbf16>, vector<128x128xbf16>, vector<16x128xf32> -> vector<16x128xf32>
    %10 = vector.extract_strided_slice %5 {offsets = [0, 0], sizes = [1, 128], strides = [1, 1]} : vector<8x128xf32> to vector<1x128xf32>
    %11 = vector.broadcast %10 : vector<1x128xf32> to vector<16x128xf32>
    %12 = arith.addf %9, %11 : vector<16x128xf32>
    %13 = arith.truncf %12 : vector<16x128xf32> to vector<16x128xbf16>
    %14 = math.tanh %13 : vector<16x128xbf16>
    %c1 = arith.constant 1 : index
    %c0_13 = arith.constant 0 : index
    %c0_14 = arith.constant 0 : index
    %15 = vector.load %arg2[%c1, %c0_13, %c0_14] : memref<4x128x128xbf16, #tpu.memory_space<vmem>>, vector<1x128x128xbf16>
    %16 = vector.shape_cast %15 : vector<1x128x128xbf16> to vector<128x128xbf16>
    %cst_15 = arith.constant dense<0.000000e+00> : vector<16x128xf32>
    %17 = tpu.matmul %14, %16, %cst_15 {dimension_numbers = #tpu.dot_dimension_numbers<[1], [0], [0], [1], [0, 0, 1, 1], [], []>} : vector<16x128xbf16>, vector<128x128xbf16>, vector<16x128xf32> -> vector<16x128xf32>
    %18 = vector.extract_strided_slice %5 {offsets = [1, 0], sizes = [1, 128], strides = [1, 1]} : vector<8x128xf32> to vector<1x128xf32>
    %19 = vector.broadcast %18 : vector<1x128xf32> to vector<16x128xf32>
    %20 = arith.addf %17, %19 : vector<16x128xf32>
    %21 = arith.truncf %20 : vector<16x128xf32> to vector<16x128xbf16>
    %22 = math.tanh %21 : vector<16x128xbf16>
    %c2 = arith.constant 2 : index
    %c0_16 = arith.constant 0 : index
    %c0_17 = arith.constant 0 : index
    %23 = vector.load %arg2[%c2, %c0_16, %c0_17] : memref<4x128x128xbf16, #tpu.memory_space<vmem>>, vector<1x128x128xbf16>
    %24 = vector.shape_cast %23 : vector<1x128x128xbf16> to vector<128x128xbf16>
    %cst_18 = arith.constant dense<0.000000e+00> : vector<16x128xf32>
    %25 = tpu.matmul %22, %24, %cst_18 {dimension_numbers = #tpu.dot_dimension_numbers<[1], [0], [0], [1], [0, 0, 1, 1], [], []>} : vector<16x128xbf16>, vector<128x128xbf16>, vector<16x128xf32> -> vector<16x128xf32>
    %26 = vector.extract_strided_slice %5 {offsets = [2, 0], sizes = [1, 128], strides = [1, 1]} : vector<8x128xf32> to vector<1x128xf32>
    %27 = vector.broadcast %26 : vector<1x128xf32> to vector<16x128xf32>
    %28 = arith.addf %25, %27 : vector<16x128xf32>
    %29 = arith.truncf %28 : vector<16x128xf32> to vector<16x128xbf16>
    %30 = math.tanh %29 : vector<16x128xbf16>
    %c3 = arith.constant 3 : index
    %c0_19 = arith.constant 0 : index
    %c0_20 = arith.constant 0 : index
    %31 = vector.load %arg2[%c3, %c0_19, %c0_20] : memref<4x128x128xbf16, #tpu.memory_space<vmem>>, vector<1x128x128xbf16>
    %32 = vector.shape_cast %31 : vector<1x128x128xbf16> to vector<128x128xbf16>
    %cst_21 = arith.constant dense<0.000000e+00> : vector<16x128xf32>
    %33 = tpu.matmul %30, %32, %cst_21 {dimension_numbers = #tpu.dot_dimension_numbers<[1], [0], [0], [1], [0, 0, 1, 1], [], []>} : vector<16x128xbf16>, vector<128x128xbf16>, vector<16x128xf32> -> vector<16x128xf32>
    %34 = vector.extract_strided_slice %5 {offsets = [3, 0], sizes = [1, 128], strides = [1, 1]} : vector<8x128xf32> to vector<1x128xf32>
    %35 = vector.broadcast %34 : vector<1x128xf32> to vector<16x128xf32>
    %36 = arith.addf %33, %35 : vector<16x128xf32>
    %37 = tpu.iota {dimensions = array<i32: 1>} : vector<16x128xi32>
    %c3_i32 = arith.constant 3 : i32
    %38 = vector.broadcast %c3_i32 : i32 to vector<16x128xi32>
    %39 = arith.cmpi slt, %37, %38 : vector<16x128xi32>
    %cst_22 = arith.constant -1.000000e+30 : f32
    %40 = vector.broadcast %cst_22 : f32 to vector<16x128xf32>
    %41 = arith.select %39, %36, %40 : vector<16x128xi1>, vector<16x128xf32>
    %cst_23 = arith.constant dense<0xFF800000> : vector<16xf32>
    %42 = vector.multi_reduction <maximumf>, %41, %cst_23 [1] : vector<16x128xf32> to vector<16xf32>
    %43 = vector.shape_cast %42 : vector<16xf32> to vector<16x1xf32>
    %44 = vector.broadcast %43 : vector<16x1xf32> to vector<16x128xf32>
    %45 = arith.subf %41, %44 : vector<16x128xf32>
    %46 = math.exp %45 : vector<16x128xf32>
    %cst_24 = arith.constant dense<0.000000e+00> : vector<16xf32>
    %47 = vector.multi_reduction <add>, %46, %cst_24 [1] : vector<16x128xf32> to vector<16xf32>
    %48 = vector.shape_cast %47 : vector<16xf32> to vector<16x1xf32>
    %49 = tpu.reciprocal %48 {approx = true} : vector<16x1xf32> -> vector<16x1xf32>
    %50 = arith.mulf %48, %49 : vector<16x1xf32>
    %cst_25 = arith.constant 2.000000e+00 : f32
    %51 = vector.broadcast %cst_25 : f32 to vector<16x1xf32>
    %52 = arith.subf %51, %50 : vector<16x1xf32>
    %53 = arith.mulf %49, %52 : vector<16x1xf32>
    %54 = vector.broadcast %53 : vector<16x1xf32> to vector<16x128xf32>
    %55 = arith.mulf %46, %54 : vector<16x128xf32>
    %c0_26 = arith.constant 0 : index
    %c0_27 = arith.constant 0 : index
    %56 = vector.load %arg4[%c0_26, %c0_27] : memref<16x128xf32, #tpu.memory_space<vmem>>, vector<16x128xf32>
    tpu.vector_store %arg4[%c0_26, %c0_27], %55 {strides = array<i32>} : memref<16x128xf32, #tpu.memory_space<vmem>>, vector<16x128xf32>,
    return
  }
  func.func @transform_0(%arg0: i32) -> (i32, i32) {
    %c0_i32 = arith.constant 0 : i32
    %c0_i32_0 = arith.constant 0 : i32
    return %arg0, %c0_i32 : i32, i32
  }
  func.func @transform_1(%arg0: i32) -> (i32, i32, i32) {
    %c0_i32 = arith.constant 0 : i32
    %c0_i32_0 = arith.constant 0 : i32
    %c0_i32_1 = arith.constant 0 : i32
    %c0_i32_2 = arith.constant 0 : i32
    return %c0_i32, %c0_i32_0, %c0_i32_1 : i32, i32, i32
  }
  func.func @transform_2(%arg0: i32) -> (i32, i32) {
    %c0_i32 = arith.constant 0 : i32
    %c0_i32_0 = arith.constant 0 : i32
    %c0_i32_1 = arith.constant 0 : i32
    return %c0_i32, %c0_i32_0 : i32, i32
  }
  func.func @transform_3(%arg0: i32) -> (i32, i32) {
    %c0_i32 = arith.constant 0 : i32
    %c0_i32_0 = arith.constant 0 : i32
    return %arg0, %c0_i32 : i32, i32
  }
}

</mosaic_0001>

<llo_original>
// kernel: tpu_custom_call.1
$region0: #{tpu_custom_call.1}
  #allocation0 [shape = 'u32[]', space=smem, size = 0x4, offset = 0x4, fixed_abs, tag = 'smem constant byte address 0x4 - core index']
  #allocation1 [shape = 'u32[144,128]{1,0:T(1,128)}', space=vmem, size = 0x12000, scoped, tag = 'internal scratch']
  #allocation2 [shape = 'f32[16,128]{1,0:T(8,128)}', space=vmem, size = 0x2000, scoped, tag = 'scratch operand']
  %s0 = inlined_call_operand.vmem [shape: f32[16,4], index: 0, kind: input, shape index: {}]
  %s1 = inlined_call_operand.hbm [shape: bf16[4,128,128], index: 1, kind: input, shape index: {}]
  %s2 = inlined_call_operand.vmem [shape: f32[8,128], index: 2, kind: input, shape index: {}]
  %s3 = inlined_call_operand.hbm [shape: f32[16,128], index: 3, kind: output, shape index: {}]
  %s4 = sld [smem:[#allocation0]]
  $region26: #{tpu_custom_call.1} parent=0
    _
  %s6 = ssub.s32 1, %s4
  %s7 = scalar_select 0, %s6, %s4
  $region1: #{tpu_custom_call.1} parent=0
    #allocation3 [shape = 'u8[131072]{0}', space=vmem, size = 0x20000, scoped, tag = 'input window, operand 1, single buffered']
    #allocation4 [shape = 's32[1]{0}', space=sflag, size = 0x4, scoped, tag = 'scoped memory for tpu_custom_call.1']
    #allocation5 [shape = 's32[1]{0}', space=sflag, size = 0x4, scoped, tag = 'scoped memory for tpu_custom_call.1']
    #allocation6 [shape = 'u8[8192]{0}', space=vmem, size = 0x2000, scoped, tag = 'output window, operand 0, single buffered']
    %8 = vsyncpa [#allocation4], 0
    %9 = vsyncpa [#allocation5], 0
    // Predicated region
    $region2: #{tpu_custom_call.1} parent=1 // pred_check
      _
    $region3: #{tpu_custom_call.1} parent=1 // pred_check_branch
      %11 = sbr.rel (0) target = $region5
    $region4: #{tpu_custom_call.1} parent=1 // pred_region
      _
    $region5: #{tpu_custom_call.1} parent=1 // pred_fallthru
      _
    // Predicated region
    $region6: #{tpu_custom_call.1} parent=1 // pred_check
      _
    $region7: #{tpu_custom_call.1} parent=1 // pred_check_branch
      %13 = sbr.rel (0) target = $region9
    $region8: #{tpu_custom_call.1} parent=1 // pred_region
      %s15 = ssub.s32 4096, 4096
      %16 = vsyncadd [#allocation4], %s15
      %s17 = sshll.u32 [#allocation3], 4
      %s18 = int_to_ptr.vmem [resolvable:$true] %s17
      %23 = dma.hbm_to_vmem [thread:$0]  %s1, 4096, %s18, [#allocation4], 64, 64, 4
    $region9: #{tpu_custom_call.1} parent=1 // pred_fallthru
      _
    // Predicated region
    $region10: #{tpu_custom_call.1} parent=1 // pred_check
      _
    $region11: #{tpu_custom_call.1} parent=1 // pred_check_branch
      %25 = sbr.rel (0) target = $region13
    $region12: #{tpu_custom_call.1} parent=1 // pred_region
      _
    $region13: #{tpu_custom_call.1} parent=1 // pred_fallthru
      _
    // Predicated region
    $region14: #{tpu_custom_call.1} parent=1 // pred_check
      _
    $region15: #{tpu_custom_call.1} parent=1 // pred_check_branch
      %27 = sbr.rel (0) target = $region17
    $region16: #{tpu_custom_call.1} parent=1 // pred_region
      %28 = dma.done [#allocation4], 4096
    $region17: #{tpu_custom_call.1} parent=1 // pred_fallthru
      _
    %30 = vst [vmem:[#allocation2] sm:$0xff] 0.0
    %31 = vst [vmem:[#allocation2 + $0x8] sm:$0xff] 0.0
    %v32 = vld [vmem:[%s0] sm:$0xff]
    %v33 = vld [vmem:[%s0 + $0x8] sm:$0xff]
    %vm34 = vcmask 31744
    %35 = vst.msk [vmem:[#allocation2] sm:$0xff] %vm34, %v32
    %36 = vst.msk [vmem:[#allocation2 + $0x8] sm:$0xff] %vm34, %v33
    %v37 = vld [vmem:[#allocation2] sm:$0xff]
    %v38 = vld [vmem:[#allocation2 + $0x8] sm:$0xff]
    %v39 = vld [vmem:[%s2] sm:$0xff]
    %v40 = vpack.c.bf16 %v38, %v37
    %v41 = vld [vmem:[#allocation3] sm:$0xf]
    %v42 = vld [vmem:[#allocation3 + $0x4] sm:$0xf]
    %v43 = vld [vmem:[#allocation3 + $0x8] sm:$0xf]
    %v44 = vld [vmem:[#allocation3 + $0xc] sm:$0xf]
    %v45 = vld [vmem:[#allocation3 + $0x10] sm:$0xf]
    %v46 = vld [vmem:[#allocation3 + $0x14] sm:$0xf]
    %v47 = vld [vmem:[#allocation3 + $0x18] sm:$0xf]
    %v48 = vld [vmem:[#allocation3 + $0x1c] sm:$0xf]
    %v49 = vld [vmem:[#allocation3 + $0x20] sm:$0xf]
    %v50 = vld [vmem:[#allocation3 + $0x24] sm:$0xf]
    %v51 = vld [vmem:[#allocation3 + $0x28] sm:$0xf]
    %v52 = vld [vmem:[#allocation3 + $0x2c] sm:$0xf]
    %v53 = vld [vmem:[#allocation3 + $0x30] sm:$0xf]
    %v54 = vld [vmem:[#allocation3 + $0x34] sm:$0xf]
    %v55 = vld [vmem:[#allocation3 + $0x38] sm:$0xf]
    %v56 = vld [vmem:[#allocation3 + $0x3c] sm:$0xf]
    %v57 = vlaneseq
    %v58 = vshrl.u32 %v57, 7
    %v59 = vsub.s32 0, %v58
    %v60 = vrot.slane %v39, %v59
    %v77 = vunpack.c.l.b16 %v41
    %v78 = vunpack.c.l.b16 %v42
    %v79 = vunpack.c.l.b16 %v43
    %v80 = vunpack.c.l.b16 %v44
    %v81 = vunpack.c.l.b16 %v45
    %v82 = vunpack.c.l.b16 %v46
    %v83 = vunpack.c.l.b16 %v47
    %v84 = vunpack.c.l.b16 %v48
    %v85 = vunpack.c.l.b16 %v49
    %v86 = vunpack.c.l.b16 %v50
    %v87 = vunpack.c.l.b16 %v51
    %v88 = vunpack.c.l.b16 %v52
    %v89 = vunpack.c.l.b16 %v53
    %v90 = vunpack.c.l.b16 %v54
    %v91 = vunpack.c.l.b16 %v55
    %v92 = vunpack.c.l.b16 %v56
    %v93 = vpack.c.b16 %v78, %v77
    %v94 = vpack.c.b16 %v80, %v79
    %v95 = vpack.c.b16 %v82, %v81
    %v96 = vpack.c.b16 %v84, %v83
    %v97 = vpack.c.b16 %v86, %v85
    %v98 = vpack.c.b16 %v88, %v87
    %v99 = vpack.c.b16 %v90, %v89
    %v100 = vpack.c.b16 %v92, %v91
    %109 = vmatprep.subr.bf16.mxu0 0
    %110 = vmatpush1.bf16.msra.mxu0 %v100
    %111 = vmatprep.subr.bf16.mxu0 0
    %112 = vmatpush1.bf16.msra.mxu0 %v99
    %113 = vmatprep.subr.bf16.mxu0 0
    %114 = vmatpush1.bf16.msra.mxu0 %v98
    %115 = vmatprep.subr.bf16.mxu0 0
    %116 = vmatpush1.bf16.msra.mxu0 %v97
    %117 = vmatprep.subr.bf16.mxu0 0
    %118 = vmatpush1.bf16.msra.mxu0 %v96
    %119 = vmatprep.subr.bf16.mxu0 0
    %120 = vmatpush1.bf16.msra.mxu0 %v95
    %121 = vmatprep.subr.bf16.mxu0 0
    %122 = vmatpush1.bf16.msra.mxu0 %v94
    %123 = vmatprep.subr.bf16.mxu0 0
    %124 = vmatpush1.bf16.msra.mxu0 %v93
    %125 = vmatprep.subr.bf16.mxu0 0
    %126 = vmatpush2.bf16.msra.mxu0 0
    %127 = vmatprep.subr.bf16.mxu0 0
    %128 = vmatpush2.bf16.msra.mxu0 0
    %129 = vmatprep.subr.bf16.mxu0 0
    %130 = vmatpush2.bf16.msra.mxu0 0
    %131 = vmatprep.subr.bf16.mxu0 0
    %132 = vmatpush2.bf16.msra.mxu0 0
    %133 = vmatprep.subr.bf16.mxu0 0
    %134 = vmatpush2.bf16.msra.mxu0 0
    %135 = vmatprep.subr.bf16.mxu0 0
    %136 = vmatpush2.bf16.msra.mxu0 0
    %137 = vmatprep.subr.bf16.mxu0 0
    %138 = vmatpush2.bf16.msra.mxu0 0
    %139 = vmatprep.subr.bf16.mxu0 0
    %140 = vmatpush2.bf16.msra.mxu0 0
    %141 = vmatprep.mubr.bf16.mxu0 0
    %142 = vmatmul.mubr.bf16.gmra.mxu0 %v40
    %v143 = vpop.f32.mrf.mxu0
    %v144 = vadd.f32 %v60, %v143
    %v145 = vpop.f32.mrf.mxu0
    %v146 = vpop.f32.mrf.mxu0
    %v147 = vadd.f32 %v60, %v146
    %v148 = vpop.f32.mrf.mxu0
    %149 = vdwg.mxu0
    %v150 = vpack.c.bf16 %v147, %v144
    %v151 = vtanh.bf16.pop %v150
    %s152 = scalar_lea.vmem [#allocation3], 64
    %v153 = vld [vmem:[%s152] sm:$0xf]
    %v154 = vld [vmem:[%s152 + $0x4] sm:$0xf]
    %v155 = vld [vmem:[%s152 + $0x8] sm:$0xf]
    %v156 = vld [vmem:[%s152 + $0xc] sm:$0xf]
    %v157 = vld [vmem:[%s152 + $0x10] sm:$0xf]
    %v158 = vld [vmem:[%s152 + $0x14] sm:$0xf]
    %v159 = vld [vmem:[%s152 + $0x18] sm:$0xf]
    %v160 = vld [vmem:[%s152 + $0x1c] sm:$0xf]
    %v161 = vld [vmem:[%s152 + $0x20] sm:$0xf]
    %v162 = vld [vmem:[%s152 + $0x24] sm:$0xf]
    %v163 = vld [vmem:[%s152 + $0x28] sm:$0xf]
    %v164 = vld [vmem:[%s152 + $0x2c] sm:$0xf]
    %v165 = vld [vmem:[%s152 + $0x30] sm:$0xf]
    %v166 = vld [vmem:[%s152 + $0x34] sm:$0xf]
    %v167 = vld [vmem:[%s152 + $0x38] sm:$0xf]
    %v168 = vld [vmem:[%s152 + $0x3c] sm:$0xf]
    %v169 = vlaneseq
    %v170 = vshrl.u32 %v169, 7
    %v171 = vsub.s32 1, %v170
    %v172 = vrot.slane %v39, %v171
    %v189 = vunpack.c.l.b16 %v153
    %v190 = vunpack.c.l.b16 %v154
    %v191 = vunpack.c.l.b16 %v155
    %v192 = vunpack.c.l.b16 %v156
    %v193 = vunpack.c.l.b16 %v157
    %v194 = vunpack.c.l.b16 %v158
    %v195 = vunpack.c.l.b16 %v159
    %v196 = vunpack.c.l.b16 %v160
    %v197 = vunpack.c.l.b16 %v161
    %v198 = vunpack.c.l.b16 %v162
    %v199 = vunpack.c.l.b16 %v163
    %v200 = vunpack.c.l.b16 %v164
    %v201 = vunpack.c.l.b16 %v165
    %v202 = vunpack.c.l.b16 %v166
    %v203 = vunpack.c.l.b16 %v167
    %v204 = vunpack.c.l.b16 %v168
    %v205 = vpack.c.b16 %v190, %v189
    %v206 = vpack.c.b16 %v192, %v191
    %v207 = vpack.c.b16 %v194, %v193
    %v208 = vpack.c.b16 %v196, %v195
    %v209 = vpack.c.b16 %v198, %v197
    %v210 = vpack.c.b16 %v200, %v199
    %v211 = vpack.c.b16 %v202, %v201
    %v212 = vpack.c.b16 %v204, %v203
    %221 = vmatprep.subr.bf16.mxu0 0
    %222 = vmatpush1.bf16.msra.mxu0 %v212
    %223 = vmatprep.subr.bf16.mxu0 0
    %224 = vmatpush1.bf16.msra.mxu0 %v211
    %225 = vmatprep.subr.bf16.mxu0 0
    %226 = vmatpush1.bf16.msra.mxu0 %v210
    %227 = vmatprep.subr.bf16.mxu0 0
    %228 = vmatpush1.bf16.msra.mxu0 %v209
    %229 = vmatprep.subr.bf16.mxu0 0
    %230 = vmatpush1.bf16.msra.mxu0 %v208
    %231 = vmatprep.subr.bf16.mxu0 0
    %232 = vmatpush1.bf16.msra.mxu0 %v207
    %233 = vmatprep.subr.bf16.mxu0 0
    %234 = vmatpush1.bf16.msra.mxu0 %v206
    %235 = vmatprep.subr.bf16.mxu0 0
    %236 = vmatpush1.bf16.msra.mxu0 %v205
    %237 = vmatprep.subr.bf16.mxu0 0
    %238 = vmatpush2.bf16.msra.mxu0 0
    %239 = vmatprep.subr.bf16.mxu0 0
    %240 = vmatpush2.bf16.msra.mxu0 0
    %241 = vmatprep.subr.bf16.mxu0 0
    %242 = vmatpush2.bf16.msra.mxu0 0
    %243 = vmatprep.subr.bf16.mxu0 0
    %244 = vmatpush2.bf16.msra.mxu0 0
    %245 = vmatprep.subr.bf16.mxu0 0
    %246 = vmatpush2.bf16.msra.mxu0 0
    %247 = vmatprep.subr.bf16.mxu0 0
    %248 = vmatpush2.bf16.msra.mxu0 0
    %249 = vmatprep.subr.bf16.mxu0 0
    %250 = vmatpush2.bf16.msra.mxu0 0
    %251 = vmatprep.subr.bf16.mxu0 0
    %252 = vmatpush2.bf16.msra.mxu0 0
    %253 = vmatprep.mubr.bf16.mxu0 0
    %254 = vmatmul.mubr.bf16.gmra.mxu0 %v151
    %v255 = vpop.f32.mrf.mxu0
    %v256 = vadd.f32 %v172, %v255
    %v257 = vpop.f32.mrf.mxu0
    %v258 = vpop.f32.mrf.mxu0
    %v259 = vadd.f32 %v172, %v258
    %v260 = vpop.f32.mrf.mxu0
    %261 = vdwg.mxu0
    %v262 = vpack.c.bf16 %v259, %v256
    %v263 = vtanh.bf16.pop %v262
    %s264 = scalar_lea.vmem [#allocation3], 128
    %v265 = vld [vmem:[%s264] sm:$0xf]
    %v266 = vld [vmem:[%s264 + $0x4] sm:$0xf]
    %v267 = vld [vmem:[%s264 + $0x8] sm:$0xf]
    %v268 = vld [vmem:[%s264 + $0xc] sm:$0xf]
    %v269 = vld [vmem:[%s264 + $0x10] sm:$0xf]
    %v270 = vld [vmem:[%s264 + $0x14] sm:$0xf]
    %v271 = vld [vmem:[%s264 + $0x18] sm:$0xf]
    %v272 = vld [vmem:[%s264 + $0x1c] sm:$0xf]
    %v273 = vld [vmem:[%s264 + $0x20] sm:$0xf]
    %v274 = vld [vmem:[%s264 + $0x24] sm:$0xf]
    %v275 = vld [vmem:[%s264 + $0x28] sm:$0xf]
    %v276 = vld [vmem:[%s264 + $0x2c] sm:$0xf]
    %v277 = vld [vmem:[%s264 + $0x30] sm:$0xf]
    %v278 = vld [vmem:[%s264 + $0x34] sm:$0xf]
    %v279 = vld [vmem:[%s264 + $0x38] sm:$0xf]
    %v280 = vld [vmem:[%s264 + $0x3c] sm:$0xf]
    %v281 = vlaneseq
    %v282 = vshrl.u32 %v281, 7
    %v283 = vsub.s32 2, %v282
    %v284 = vrot.slane %v39, %v283
    %v301 = vunpack.c.l.b16 %v265
    %v302 = vunpack.c.l.b16 %v266
    %v303 = vunpack.c.l.b16 %v267
    %v304 = vunpack.c.l.b16 %v268
    %v305 = vunpack.c.l.b16 %v269
    %v306 = vunpack.c.l.b16 %v270
    %v307 = vunpack.c.l.b16 %v271
    %v308 = vunpack.c.l.b16 %v272
    %v309 = vunpack.c.l.b16 %v273
    %v310 = vunpack.c.l.b16 %v274
    %v311 = vunpack.c.l.b16 %v275
    %v312 = vunpack.c.l.b16 %v276
    %v313 = vunpack.c.l.b16 %v277
    %v314 = vunpack.c.l.b16 %v278
    %v315 = vunpack.c.l.b16 %v279
    %v316 = vunpack.c.l.b16 %v280
    %v317 = vpack.c.b16 %v302, %v301
    %v318 = vpack.c.b16 %v304, %v303
    %v319 = vpack.c.b16 %v306, %v305
    %v320 = vpack.c.b16 %v308, %v307
    %v321 = vpack.c.b16 %v310, %v309
    %v322 = vpack.c.b16 %v312, %v311
    %v323 = vpack.c.b16 %v314, %v313
    %v324 = vpack.c.b16 %v316, %v315
    %333 = vmatprep.subr.bf16.mxu0 0
    %334 = vmatpush1.bf16.msra.mxu0 %v324
    %335 = vmatprep.subr.bf16.mxu0 0
    %336 = vmatpush1.bf16.msra.mxu0 %v323
    %337 = vmatprep.subr.bf16.mxu0 0
    %338 = vmatpush1.bf16.msra.mxu0 %v322
    %339 = vmatprep.subr.bf16.mxu0 0
    %340 = vmatpush1.bf16.msra.mxu0 %v321
    %341 = vmatprep.subr.bf16.mxu0 0
    %342 = vmatpush1.bf16.msra.mxu0 %v320
    %343 = vmatprep.subr.bf16.mxu0 0
    %344 = vmatpush1.bf16.msra.mxu0 %v319
    %345 = vmatprep.subr.bf16.mxu0 0
    %346 = vmatpush1.bf16.msra.mxu0 %v318
    %347 = vmatprep.subr.bf16.mxu0 0
    %348 = vmatpush1.bf16.msra.mxu0 %v317
    %349 = vmatprep.subr.bf16.mxu0 0
    %350 = vmatpush2.bf16.msra.mxu0 0
    %351 = vmatprep.subr.bf16.mxu0 0
    %352 = vmatpush2.bf16.msra.mxu0 0
    %353 = vmatprep.subr.bf16.mxu0 0
    %354 = vmatpush2.bf16.msra.mxu0 0
    %355 = vmatprep.subr.bf16.mxu0 0
    %356 = vmatpush2.bf16.msra.mxu0 0
    %357 = vmatprep.subr.bf16.mxu0 0
    %358 = vmatpush2.bf16.msra.mxu0 0
    %359 = vmatprep.subr.bf16.mxu0 0
    %360 = vmatpush2.bf16.msra.mxu0 0
    %361 = vmatprep.subr.bf16.mxu0 0
    %362 = vmatpush2.bf16.msra.mxu0 0
    %363 = vmatprep.subr.bf16.mxu0 0
    %364 = vmatpush2.bf16.msra.mxu0 0
    %365 = vmatprep.mubr.bf16.mxu0 0
    %366 = vmatmul.mubr.bf16.gmra.mxu0 %v263
    %v367 = vpop.f32.mrf.mxu0
    %v368 = vadd.f32 %v284, %v367
    %v369 = vpop.f32.mrf.mxu0
    %v370 = vpop.f32.mrf.mxu0
    %v371 = vadd.f32 %v284, %v370
    %v372 = vpop.f32.mrf.mxu0
    %373 = vdwg.mxu0
    %v374 = vpack.c.bf16 %v371, %v368
    %v375 = vtanh.bf16.pop %v374
    %s376 = scalar_lea.vmem [#allocation3], 192
    %v377 = vld [vmem:[%s376] sm:$0xf]
    %v378 = vld [vmem:[%s376 + $0x4] sm:$0xf]
    %v379 = vld [vmem:[%s376 + $0x8] sm:$0xf]
    %v380 = vld [vmem:[%s376 + $0xc] sm:$0xf]
    %v381 = vld [vmem:[%s376 + $0x10] sm:$0xf]
    %v382 = vld [vmem:[%s376 + $0x14] sm:$0xf]
    %v383 = vld [vmem:[%s376 + $0x18] sm:$0xf]
    %v384 = vld [vmem:[%s376 + $0x1c] sm:$0xf]
    %v385 = vld [vmem:[%s376 + $0x20] sm:$0xf]
    %v386 = vld [vmem:[%s376 + $0x24] sm:$0xf]
    %v387 = vld [vmem:[%s376 + $0x28] sm:$0xf]
    %v388 = vld [vmem:[%s376 + $0x2c] sm:$0xf]
    %v389 = vld [vmem:[%s376 + $0x30] sm:$0xf]
    %v390 = vld [vmem:[%s376 + $0x34] sm:$0xf]
    %v391 = vld [vmem:[%s376 + $0x38] sm:$0xf]
    %v392 = vld [vmem:[%s376 + $0x3c] sm:$0xf]
    %v393 = vlaneseq
    %v394 = vshrl.u32 %v393, 7
    %v395 = vsub.s32 3, %v394
    %v396 = vrot.slane %v39, %v395
    %v413 = vunpack.c.l.b16 %v377
    %v414 = vunpack.c.l.b16 %v378
    %v415 = vunpack.c.l.b16 %v379
    %v416 = vunpack.c.l.b16 %v380
    %v417 = vunpack.c.l.b16 %v381
    %v418 = vunpack.c.l.b16 %v382
    %v419 = vunpack.c.l.b16 %v383
    %v420 = vunpack.c.l.b16 %v384
    %v421 = vunpack.c.l.b16 %v385
    %v422 = vunpack.c.l.b16 %v386
    %v423 = vunpack.c.l.b16 %v387
    %v424 = vunpack.c.l.b16 %v388
    %v425 = vunpack.c.l.b16 %v389
    %v426 = vunpack.c.l.b16 %v390
    %v427 = vunpack.c.l.b16 %v391
    %v428 = vunpack.c.l.b16 %v392
    %v429 = vpack.c.b16 %v414, %v413
    %v430 = vpack.c.b16 %v416, %v415
    %v431 = vpack.c.b16 %v418, %v417
    %v432 = vpack.c.b16 %v420, %v419
    %v433 = vpack.c.b16 %v422, %v421
    %v434 = vpack.c.b16 %v424, %v423
    %v435 = vpack.c.b16 %v426, %v425
    %v436 = vpack.c.b16 %v428, %v427
    %445 = vmatprep.subr.bf16.mxu0 0
    %446 = vmatpush1.bf16.msra.mxu0 %v436
    %447 = vmatprep.subr.bf16.mxu0 0
    %448 = vmatpush1.bf16.msra.mxu0 %v435
    %449 = vmatprep.subr.bf16.mxu0 0
    %450 = vmatpush1.bf16.msra.mxu0 %v434
    %451 = vmatprep.subr.bf16.mxu0 0
    %452 = vmatpush1.bf16.msra.mxu0 %v433
    %453 = vmatprep.subr.bf16.mxu0 0
    %454 = vmatpush1.bf16.msra.mxu0 %v432
    %455 = vmatprep.subr.bf16.mxu0 0
    %456 = vmatpush1.bf16.msra.mxu0 %v431
    %457 = vmatprep.subr.bf16.mxu0 0
    %458 = vmatpush1.bf16.msra.mxu0 %v430
    %459 = vmatprep.subr.bf16.mxu0 0
    %460 = vmatpush1.bf16.msra.mxu0 %v429
    %461 = vmatprep.subr.bf16.mxu0 0
    %462 = vmatpush2.bf16.msra.mxu0 0
    %463 = vmatprep.subr.bf16.mxu0 0
    %464 = vmatpush2.bf16.msra.mxu0 0
    %465 = vmatprep.subr.bf16.mxu0 0
    %466 = vmatpush2.bf16.msra.mxu0 0
    %467 = vmatprep.subr.bf16.mxu0 0
    %468 = vmatpush2.bf16.msra.mxu0 0
    %469 = vmatprep.subr.bf16.mxu0 0
    %470 = vmatpush2.bf16.msra.mxu0 0
    %471 = vmatprep.subr.bf16.mxu0 0
    %472 = vmatpush2.bf16.msra.mxu0 0
    %473 = vmatprep.subr.bf16.mxu0 0
    %474 = vmatpush2.bf16.msra.mxu0 0
    %475 = vmatprep.subr.bf16.mxu0 0
    %476 = vmatpush2.bf16.msra.mxu0 0
    %477 = vmatprep.mubr.bf16.mxu0 0
    %478 = vmatmul.mubr.bf16.gmra.mxu0 %v375
    %v479 = vpop.f32.mrf.mxu0
    %v480 = vadd.f32 %v396, %v479
    %v481 = vpop.f32.mrf.mxu0
    %v482 = vpop.f32.mrf.mxu0
    %v483 = vadd.f32 %v396, %v482
    %v484 = vpop.f32.mrf.mxu0
    %485 = vdwg.mxu0
    %v486 = vlaneseq
    %v487 = vand.u32 %v486, 127
    %vm488 = vcmp.lt.s32.totalorder %v487, 3
    %v489 = vsel %vm488, %v480, -1e+30
    %v490 = vsel %vm488, %v483, -1e+30
    %491 = vmax.xlane.f32.xlu0 %v489
    %v492 = vpop.xlane.xlu0 %491
    %493 = vmax.xlane.f32.xlu0 %v490
    %v494 = vpop.xlane.xlu0 %493
    %v495 = vsub.f32 %v489, %v492
    %v496 = vsub.f32 %v490, %v494
    %v497 = vmul.f32 %v495, 1.442695
    %v498 = vpow.pop %v497
    %v499 = vmul.f32 %v496, 1.442695
    %v500 = vpow.pop %v499
    %501 = vadd.xlane.f32.xlu0 %v498
    %v502 = vpop.xlane.xlu0 %501
    %503 = vadd.xlane.f32.xlu0 %v500
    %v504 = vpop.xlane.xlu0 %503
    %v505 = vrcp.pop %v502
    %v506 = vrcp.pop %v504
    %v507 = vmul.f32 %v502, %v505
    %v508 = vmul.f32 %v504, %v506
    %v509 = vsub.f32 2.0, %v507
    %v510 = vsub.f32 2.0, %v508
    %v511 = vmul.f32 %v505, %v509
    %v512 = vmul.f32 %v506, %v510
    %v513 = vmul.f32 %v498, %v511
    %v514 = vmul.f32 %v500, %v512
    %515 = vst [vmem:[#allocation6] sm:$0xff] %v513
    %516 = vst [vmem:[#allocation6 + $0x8] sm:$0xff] %v514
    // Predicated region
    $region18: #{tpu_custom_call.1} parent=1 // pred_check
      _
    $region19: #{tpu_custom_call.1} parent=1 // pred_check_branch
      %518 = sbr.rel (0) target = $region21
    $region20: #{tpu_custom_call.1} parent=1 // pred_region
      %s520 = ssub.s32 256, 256
      %521 = vsyncadd [#allocation5], %s520
      %s522 = sshll.u32 [#allocation6], 4
      %s523 = int_to_ptr.vmem [resolvable:$true] %s522
      %528 = dma.vmem_to_hbm [thread:$0]  %s523, 256, %s3, [#allocation5], 128, 128, 8
    $region21: #{tpu_custom_call.1} parent=1 // pred_fallthru
      _
    // Predicated region
    $region22: #{tpu_custom_call.1} parent=1 // pred_check
      _
    $region23: #{tpu_custom_call.1} parent=1 // pred_check_branch
      %530 = sbr.rel (0) target = $region25
    $region24: #{tpu_custom_call.1} parent=1 // pred_region
      %531 = dma.done [#allocation5], 256
    $region25: #{tpu_custom_call.1} parent=1 // pred_fallthru
      _
    %532 = vsyncpa [#allocation4], 1
    %533 = vsyncpa [#allocation5], 1

</llo_original>
